<compile_context>
chip_gen: v5e
topology: v5e:2x2
jax: 0.10.0
libtpu: 0.0.40
codegen_flags: <defaults>
</compile_context>

<pallas_src>
import functools

import jax
import jax.numpy as jnp
from jax.experimental import pallas as pl
from jax.experimental.pallas import tpu as pltpu


def _self_attention_kernel(x_ref, wqkv_ref, bqkv_ref, o_ref, *, dims, scale):
    # x_ref:    (block_b, S, d_model)   batch block of activations
    # wqkv_ref: (d_model, 3*dims)       fused Q|K|V weights (VMEM-resident)
    # bqkv_ref: (1, 3*dims)             fused Q|K|V biases  (VMEM-resident)
    # o_ref:    (block_b, S, dims)
    bb, seq, d_model = x_ref.shape

    # Fused QKV projection: one matmul over the flattened token slab.
    x2d = x_ref[...].reshape(bb * seq, d_model)                      # (bb*S, D)
    qkv = jnp.dot(x2d, wqkv_ref[...],
                  preferred_element_type=jnp.float32) + bqkv_ref[...]
    qkv = qkv.reshape(bb, seq, 3 * dims)

    q = qkv[:, :, 0 * dims:1 * dims]                                 # (bb, S, dims)
    k = qkv[:, :, 1 * dims:2 * dims]
    v = qkv[:, :, 2 * dims:3 * dims]

    # Scaled scores + numerically-stable softmax, all in VMEM / f32.
    s = jnp.einsum('bqd,bkd->bqk', q, k,
                   preferred_element_type=jnp.float32) * scale       # (bb, S, S)
    m = jnp.max(s, axis=-1, keepdims=True)
    p = jnp.exp(s - m)
    denom = jnp.sum(p, axis=-1, keepdims=True)
    attn = p / denom

    out = jnp.einsum('bqk,bkd->bqd', attn, v,
                     preferred_element_type=jnp.float32)             # (bb, S, dims)
    o_ref[...] = out.astype(o_ref.dtype)


def self_attention(x, wqkv, bqkv, dims, *, block_b=None):
    """Fused self-attention forward.

    x:    (B, S, d_model) f32
    wqkv: (d_model, 3*dims) f32  — columns are [Wq | Wk | Wv] (pre-transposed
                                    vs. torch's (out, in) layout)
    bqkv: (1, 3*dims) f32        — [bq | bk | bv]
    returns (B, S, dims) f32
    """
    batch, seq, d_model = x.shape
    scale = float(dims) ** -0.5

    if block_b is None:
        # Largest batch block whose per-step working set stays well inside VMEM
        # (scores (S,S) + activations + qkv, f32, with double-buffering slack).
        per_elem_bytes = 4 * (seq * d_model + 2 * seq * 3 * dims
                              + 2 * seq * seq + 2 * seq * dims)
        budget = 8 * 1024 * 1024
        block_b = max(1, budget // max(per_elem_bytes, 1))
    block_b = int(min(block_b, batch))

    kernel = functools.partial(_self_attention_kernel, dims=dims, scale=scale)

    return pl.pallas_call(
        kernel,
        out_shape=jax.ShapeDtypeStruct((batch, seq, dims), x.dtype),
        grid=(pl.cdiv(batch, block_b),),
        in_specs=[
            pl.BlockSpec((block_b, seq, d_model), lambda b: (b, 0, 0)),  # x
            pl.BlockSpec((d_model, 3 * dims), lambda b: (0, 0)),         # Wqkv
            pl.BlockSpec((1, 3 * dims), lambda b: (0, 0)),               # bqkv
        ],
        out_specs=pl.BlockSpec((block_b, seq, dims), lambda b: (b, 0, 0)),
        compiler_params=pltpu.CompilerParams(
            dimension_semantics=("parallel",),   # batch blocks are independent
        ),
    )(x, wqkv, bqkv)


class SelfAttention:
    """JAX/Pallas port of the PyTorch `SelfAttention` module."""

    def __init__(self, dims: int, d_model: int, key: jax.Array):
        self.dims = dims
        self.d_model = d_model
        # nn.Linear default init: U(-1/sqrt(fan_in), 1/sqrt(fan_in)) for weight
        # and bias. Weights stored pre-transposed as (d_model, dims).
        bound = 1.0 / (d_model ** 0.5)
        keys = jax.random.split(key, 6)
        uni = lambda k, shape: jax.random.uniform(
            k, shape, jnp.float32, minval=-bound, maxval=bound)
        self.wq = uni(keys[0], (d_model, dims))
        self.wk = uni(keys[1], (d_model, dims))
        self.wv = uni(keys[2], (d_model, dims))
        self.bq = uni(keys[3], (1, dims))
        self.bk = uni(keys[4], (1, dims))
        self.bv = uni(keys[5], (1, dims))
        # Fused Q|K|V slab (built once; the kernel keeps it VMEM-resident).
        self.wqkv = jnp.concatenate([self.wq, self.wk, self.wv], axis=1)
        self.bqkv = jnp.concatenate([self.bq, self.bk, self.bv], axis=1)

    def __call__(self, x: jax.Array) -> jax.Array:
        return self_attention(x, self.wqkv, self.bqkv, self.dims)


def _reference(x, wq, wk, wv, bq, bk, bv, dims):
    q = jnp.einsum('bsd,de->bse', x, wq) + bq
    k = jnp.einsum('bsd,de->bse', x, wk) + bk
    v = jnp.einsum('bsd,de->bse', x, wv) + bv
    s = jnp.einsum('bse,bte->bst', q, k) * (dims ** -0.5)
    p = jax.nn.softmax(s, axis=-1)
    return jnp.einsum('bst,bte->bse', p, v)


if __name__ == "__main__":
    d_model = 32
    dims = 16
    batch, seq = 2, 8

    key = jax.random.PRNGKey(0)
    k_params, k_x = jax.random.split(key)

    attn = SelfAttention(dims, d_model, k_params)
    x = jax.random.normal(k_x, (batch, seq, d_model), jnp.float32)

    out = attn(x)
    out = jax.block_until_ready(out)

    ref = _reference(x, attn.wq, attn.wk, attn.wv,
                     attn.bq, attn.bk, attn.bv, dims)

    assert out.shape == (batch, seq, dims), out.shape
    assert out.dtype == jnp.float32, out.dtype
    assert jnp.allclose(out, ref, atol=1e-5, rtol=1e-5), "mismatch vs reference"

    print("KERNEL_OK")
</pallas_src>

<mosaic_0001>
module attributes {stable_mosaic.version = 11 : i64} {
  func.func @_self_attention_kernel(%arg0: i32, %arg1: memref<2x8x32xf32, #tpu.memory_space<vmem>>, %arg2: memref<32x48xf32, #tpu.memory_space<vmem>>, %arg3: memref<1x48xf32, #tpu.memory_space<vmem>>, %arg4: memref<2x8x16xf32, #tpu.memory_space<vmem>>) attributes {dimension_semantics = [#tpu.dimension_semantics<parallel>], iteration_bounds = array<i64: 1>, scalar_prefetch = 0 : i64, scratch_operands = 0 : i64, tpu.core_type = #tpu.core_type<tc>, window_params = [{transform_indices = @transform_0, window_bounds = array<i64: 2, 8, 32>}, {pipeline_mode = #tpu.pipeline_mode<synchronous>, transform_indices = @transform_1, window_bounds = array<i64: 32, 48>}, {pipeline_mode = #tpu.pipeline_mode<synchronous>, transform_indices = @transform_2, window_bounds = array<i64: 1, 48>}, {transform_indices = @transform_3, window_bounds = array<i64: 2, 8, 16>}]} {
    %c0 = arith.constant 0 : index
    %c0_0 = arith.constant 0 : index
    %c0_1 = arith.constant 0 : index
    %0 = vector.load %arg1[%c0, %c0_0, %c0_1] : memref<2x8x32xf32, #tpu.memory_space<vmem>>, vector<2x8x32xf32>
    %1 = vector.shape_cast %0 : vector<2x8x32xf32> to vector<16x32xf32>
    %c0_2 = arith.constant 0 : index
    %c0_3 = arith.constant 0 : index
    %2 = vector.load %arg2[%c0_2, %c0_3] : memref<32x48xf32, #tpu.memory_space<vmem>>, vector<32x48xf32>
    %cst = arith.constant dense<0.000000e+00> : vector<16x48xf32>
    %3 = tpu.matmul %1, %2, %cst {dimension_numbers = #tpu.dot_dimension_numbers<[1], [0], [0], [1], [0, 0, 1, 1], [], []>} : vector<16x32xf32>, vector<32x48xf32>, vector<16x48xf32> -> vector<16x48xf32>
    %c0_4 = arith.constant 0 : index
    %c0_5 = arith.constant 0 : index
    %4 = vector.load %arg3[%c0_4, %c0_5] : memref<1x48xf32, #tpu.memory_space<vmem>>, vector<1x48xf32>
    %5 = vector.broadcast %4 : vector<1x48xf32> to vector<16x48xf32>
    %6 = arith.addf %3, %5 : vector<16x48xf32>
    %7 = vector.shape_cast %6 : vector<16x48xf32> to vector<2x8x48xf32>
    %8 = vector.extract_strided_slice %7 {offsets = [0, 0, 0], sizes = [2, 8, 16], strides = [1, 1, 1]} : vector<2x8x48xf32> to vector<2x8x16xf32>
    %9 = vector.extract_strided_slice %7 {offsets = [0, 0, 16], sizes = [2, 8, 16], strides = [1, 1, 1]} : vector<2x8x48xf32> to vector<2x8x16xf32>
    %10 = vector.extract_strided_slice %7 {offsets = [0, 0, 32], sizes = [2, 8, 16], strides = [1, 1, 1]} : vector<2x8x48xf32> to vector<2x8x16xf32>
    "tpu.trace_start"() <{level = 10 : i32, message = "bqd,bkd->bqk"}> : () -> ()
    %cst_6 = arith.constant dense<0.000000e+00> : vector<2x8x8xf32>
    %11 = tpu.matmul %8, %9, %cst_6 {dimension_numbers = #tpu.dot_dimension_numbers<[2], [2], [1], [1], [0, 0, 0, 1, 1, 1], [0], [0]>} : vector<2x8x16xf32>, vector<2x8x16xf32>, vector<2x8x8xf32> -> vector<2x8x8xf32>
    "tpu.trace_stop"() : () -> ()
    %cst_7 = arith.constant 2.500000e-01 : f32
    %12 = vector.broadcast %cst_7 : f32 to vector<2x8x8xf32>
    %13 = arith.mulf %11, %12 : vector<2x8x8xf32>
    %cst_8 = arith.constant dense<0xFF800000> : vector<2x8xf32>
    %14 = vector.multi_reduction <maximumf>, %13, %cst_8 [2] : vector<2x8x8xf32> to vector<2x8xf32>
    %15 = vector.shape_cast %14 : vector<2x8xf32> to vector<2x8x1xf32>
    %16 = vector.broadcast %15 : vector<2x8x1xf32> to vector<2x8x8xf32>
    %17 = arith.subf %13, %16 : vector<2x8x8xf32>
    %18 = math.exp %17 : vector<2x8x8xf32>
    %cst_9 = arith.constant dense<0.000000e+00> : vector<2x8xf32>
    %19 = vector.multi_reduction <add>, %18, %cst_9 [2] : vector<2x8x8xf32> to vector<2x8xf32>
    %20 = vector.shape_cast %19 : vector<2x8xf32> to vector<2x8x1xf32>
    %21 = vector.broadcast %20 : vector<2x8x1xf32> to vector<2x8x8xf32>
    %22 = arith.divf %18, %21 : vector<2x8x8xf32>
    "tpu.trace_start"() <{level = 10 : i32, message = "bqk,bkd->bqd"}> : () -> ()
    %cst_10 = arith.constant dense<0.000000e+00> : vector<2x8x16xf32>
    %23 = tpu.matmul %22, %10, %cst_10 {dimension_numbers = #tpu.dot_dimension_numbers<[2], [1], [1], [2], [0, 0, 0, 1, 1, 2], [0], [0]>} : vector<2x8x8xf32>, vector<2x8x16xf32>, vector<2x8x16xf32> -> vector<2x8x16xf32>
    "tpu.trace_stop"() : () -> ()
    %c0_11 = arith.constant 0 : index
    %c0_12 = arith.constant 0 : index
    %c0_13 = arith.constant 0 : index
    %24 = vector.load %arg4[%c0_11, %c0_12, %c0_13] : memref<2x8x16xf32, #tpu.memory_space<vmem>>, vector<2x8x16xf32>
    tpu.vector_store %arg4[%c0_11, %c0_12, %c0_13], %23 {strides = array<i32>} : memref<2x8x16xf32, #tpu.memory_space<vmem>>, vector<2x8x16xf32>,
    return
  }
  func.func @transform_0(%arg0: i32) -> (i32, i32, i32) {
    %c0_i32 = arith.constant 0 : i32
    %c0_i32_0 = arith.constant 0 : i32
    %c0_i32_1 = arith.constant 0 : i32
    return %arg0, %c0_i32, %c0_i32_0 : i32, i32, i32
  }
  func.func @transform_1(%arg0: i32) -> (i32, i32) {
    %c0_i32 = arith.constant 0 : i32
    %c0_i32_0 = arith.constant 0 : i32
    %c0_i32_1 = arith.constant 0 : i32
    return %c0_i32, %c0_i32_0 : i32, i32
  }
  func.func @transform_2(%arg0: i32) -> (i32, i32) {
    %c0_i32 = arith.constant 0 : i32
    %c0_i32_0 = arith.constant 0 : i32
    %c0_i32_1 = arith.constant 0 : i32
    return %c0_i32, %c0_i32_0 : i32, i32
  }
  func.func @transform_3(%arg0: i32) -> (i32, i32, i32) {
    %c0_i32 = arith.constant 0 : i32
    %c0_i32_0 = arith.constant 0 : i32
    %c0_i32_1 = arith.constant 0 : i32
    return %arg0, %c0_i32, %c0_i32_0 : i32, i32, i32
  }
}

</mosaic_0001>

<llo_original>
// kernel: tpu_custom_call.1
$region0: #{tpu_custom_call.1}
  #allocation0 [shape = 'u32[]', space=smem, size = 0x4, offset = 0x4, fixed_abs, tag = 'smem constant byte address 0x4 - core index']
  #allocation1 [shape = 'u32[72,128]{1,0:T(1,128)}', space=vmem, size = 0x9000, scoped, tag = 'internal scratch']
  %s0 = inlined_call_operand.hbm [shape: f32[2,8,32], index: 0, kind: input, shape index: {}]
  %s1 = inlined_call_operand.hbm [shape: f32[32,48], index: 1, kind: input, shape index: {}]
  %s2 = inlined_call_operand.vmem [shape: f32[1,48], index: 2, kind: input, shape index: {}]
  %s3 = inlined_call_operand.hbm [shape: f32[2,8,16], index: 3, kind: output, shape index: {}]
  %s4 = sld [smem:[#allocation0]]
  $region30: #{tpu_custom_call.1} parent=0
    _
  %s6 = ssub.s32 1, %s4
  %s7 = scalar_select 0, %s6, %s4
  $region1: #{tpu_custom_call.1} parent=0
    #allocation2 [shape = 'u8[8192]{0}', space=vmem, size = 0x2000, scoped, tag = 'input window, operand 0, single buffered']
    #allocation3 [shape = 's32[1]{0}', space=sflag, size = 0x4, scoped, tag = 'scoped memory for tpu_custom_call.1']
    #allocation4 [shape = 's32[1]{0}', space=sflag, size = 0x4, scoped, tag = 'scoped memory for tpu_custom_call.1']
    #allocation5 [shape = 'u8[16384]{0}', space=vmem, size = 0x4000, scoped, tag = 'input window, operand 1, single buffered']
    #allocation6 [shape = 's32[1]{0}', space=sflag, size = 0x4, scoped, tag = 'scoped memory for tpu_custom_call.1']
    #allocation7 [shape = 'u8[8192]{0}', space=vmem, size = 0x2000, scoped, tag = 'output window, operand 0, single buffered']
    %8 = vsyncpa [#allocation3], 0
    %9 = vsyncpa [#allocation6], 0
    %10 = vsyncpa [#allocation4], 0
    // Predicated region
    $region2: #{tpu_custom_call.1} parent=1 // pred_check
      _
    $region3: #{tpu_custom_call.1} parent=1 // pred_check_branch
      %12 = sbr.rel (0) target = $region5
    $region4: #{tpu_custom_call.1} parent=1 // pred_region
      %14 = vsyncadd [#allocation3], 0
      %s15 = sshll.u32 %s0, 4
      %s16 = int_to_ptr.hbm [resolvable:$true] %s15
      %s17 = sshll.u32 [#allocation2], 4
      %s18 = int_to_ptr.vmem [resolvable:$true] %s17
      %23 = dma.hbm_to_vmem [thread:$0]  %s16, 256, %s18, [#allocation3], 128, 128, 8
    $region5: #{tpu_custom_call.1} parent=1 // pred_fallthru
      _
    // Predicated region
    $region6: #{tpu_custom_call.1} parent=1 // pred_check
      _
    $region7: #{tpu_custom_call.1} parent=1 // pred_check_branch
      %25 = sbr.rel (0) target = $region9
    $region8: #{tpu_custom_call.1} parent=1 // pred_region
      %27 = vsyncadd [#allocation6], 0
      %s28 = sshll.u32 %s1, 4
      %s29 = int_to_ptr.hbm [resolvable:$true] %s28
      %s30 = sshll.u32 [#allocation5], 4
      %s31 = int_to_ptr.vmem [resolvable:$true] %s30
      %36 = dma.hbm_to_vmem [thread:$0]  %s29, 512, %s31, [#allocation6], 128, 128, 8
    $region9: #{tpu_custom_call.1} parent=1 // pred_fallthru
      _
    // Predicated region
    $region10: #{tpu_custom_call.1} parent=1 // pred_check
      _
    $region11: #{tpu_custom_call.1} parent=1 // pred_check_branch
      %38 = sbr.rel (0) target = $region13
    $region12: #{tpu_custom_call.1} parent=1 // pred_region
      _
    $region13: #{tpu_custom_call.1} parent=1 // pred_fallthru
      _
    // Predicated region
    $region14: #{tpu_custom_call.1} parent=1 // pred_check
      _
    $region15: #{tpu_custom_call.1} parent=1 // pred_check_branch
      %40 = sbr.rel (0) target = $region17
    $region16: #{tpu_custom_call.1} parent=1 // pred_region
      %42 = dma.done [#allocation3], 256
    $region17: #{tpu_custom_call.1} parent=1 // pred_fallthru
      _
    // Predicated region
    $region18: #{tpu_custom_call.1} parent=1 // pred_check
      _
    $region19: #{tpu_custom_call.1} parent=1 // pred_check_branch
      %44 = sbr.rel (0) target = $region21
    $region20: #{tpu_custom_call.1} parent=1 // pred_region
      %46 = dma.done [#allocation6], 512
    $region21: #{tpu_custom_call.1} parent=1 // pred_fallthru
      _
    %v47 = vld [vmem:[#allocation2] sm:$0xff]
    %v48 = vld [vmem:[#allocation2 + $0x8] sm:$0xff]
    %v49 = vld [vmem:[#allocation5] sm:$0xff]
    %v50 = vld [vmem:[#allocation5 + $0x8] sm:$0xff]
    %v51 = vld [vmem:[#allocation5 + $0x10] sm:$0xff]
    %v52 = vld [vmem:[#allocation5 + $0x18] sm:$0xff]
    %v53 = vld [vmem:[%s2] sm:$0x1]
    %v55 = vperm.slane %v53, 0
    %vm57 = vcmask 261120
    %v59 = vsel %vm57, %v47, 0
    %v62 = vsel %vm57, %v48, 0
    %64 = vmatpush.msra.mxu0 0.0
    %65 = vmatpush.msra.mxu0 0.0
    %66 = vmatpush.msra.mxu0 0.0
    %67 = vmatpush.msra.mxu0 0.0
    %68 = vmatpush.msra.mxu0 0.0
    %69 = vmatpush.msra.mxu0 0.0
    %70 = vmatpush.msra.mxu0 0.0
    %71 = vmatpush.msra.mxu0 0.0
    %72 = vmatpush.msra.mxu0 0.0
    %73 = vmatpush.msra.mxu0 0.0
    %74 = vmatpush.msra.mxu0 0.0
    %75 = vmatpush.msra.mxu0 0.0
    %76 = vmatpush.msra.mxu0 %v52
    %77 = vmatpush.msra.mxu0 %v51
    %78 = vmatpush.msra.mxu0 %v50
    %79 = vmatpush.msra.mxu0 %v49
    %80 = vmatmul.f32.gmra.mxu0 %v59
    %v81 = vpop.f32.mrf.mxu0
    %v82 = vadd.f32 %v55, %v81
    %83 = vmatmul.f32.gmra.mxu0 %v62
    %v84 = vpop.f32.mrf.mxu0
    %v85 = vadd.f32 %v55, %v84
    %86 = vdwg.mxu0
    %88 = vrot.lane.b32.xlu0 %v82, 112
    %v89 = vpop.permute.xlu0 %88
    %vm90 = vcmask 130048
    %v91 = vsel %vm90, %v82, 0
    %v93 = vsel %vm90, %v89, 0
    %95 = vmatpush.xpose.msra.mxu0 0.0
    %96 = vmatpush.xpose.msra.mxu0 0.0
    %97 = vmatpush.xpose.msra.mxu0 0.0
    %98 = vmatpush.xpose.msra.mxu0 0.0
    %99 = vmatpush.xpose.msra.mxu0 0.0
    %100 = vmatpush.xpose.msra.mxu0 0.0
    %101 = vmatpush.xpose.msra.mxu0 0.0
    %102 = vmatpush.xpose.msra.mxu0 0.0
    %103 = vmatpush.xpose.msra.mxu0 0.0
    %104 = vmatpush.xpose.msra.mxu0 0.0
    %105 = vmatpush.xpose.msra.mxu0 0.0
    %106 = vmatpush.xpose.msra.mxu0 0.0
    %107 = vmatpush.xpose.msra.mxu0 0.0
    %108 = vmatpush.xpose.msra.mxu0 0.0
    %109 = vmatpush.xpose.msra.mxu0 0.0
    %110 = vmatpush.xpose.msra.mxu0 %v93
    %111 = vmatmul.f32.gmra.mxu0 %v91
    %v112 = vpop.f32.mrf.mxu0
    %v113 = vadd.f32 0.0, %v112
    %114 = vdwg.mxu0
    %116 = vrot.lane.b32.xlu0 %v85, 112
    %v117 = vpop.permute.xlu0 %116
    %v118 = vsel %vm90, %v85, 0
    %v120 = vsel %vm90, %v117, 0
    %122 = vmatpush.xpose.msra.mxu0 0.0
    %123 = vmatpush.xpose.msra.mxu0 0.0
    %124 = vmatpush.xpose.msra.mxu0 0.0
    %125 = vmatpush.xpose.msra.mxu0 0.0
    %126 = vmatpush.xpose.msra.mxu0 0.0
    %127 = vmatpush.xpose.msra.mxu0 0.0
    %128 = vmatpush.xpose.msra.mxu0 0.0
    %129 = vmatpush.xpose.msra.mxu0 0.0
    %130 = vmatpush.xpose.msra.mxu0 0.0
    %131 = vmatpush.xpose.msra.mxu0 0.0
    %132 = vmatpush.xpose.msra.mxu0 0.0
    %133 = vmatpush.xpose.msra.mxu0 0.0
    %134 = vmatpush.xpose.msra.mxu0 0.0
    %135 = vmatpush.xpose.msra.mxu0 0.0
    %136 = vmatpush.xpose.msra.mxu0 0.0
    %137 = vmatpush.xpose.msra.mxu0 %v120
    %138 = vmatmul.f32.gmra.mxu0 %v118
    %v139 = vpop.f32.mrf.mxu0
    %v140 = vadd.f32 0.0, %v139
    %141 = vdwg.mxu0
    %v142 = vmul.f32 %v113, 0.25
    %v143 = vmul.f32 %v140, 0.25
    %vm144 = vcmask 64512
    %v145 = vsel %vm144, %v142, -inf
    %146 = vmax.xlane.f32.xlu0 %v145
    %v147 = vpop.xlane.xlu0 %146
    %v148 = vsel %vm144, %v143, -inf
    %149 = vmax.xlane.f32.xlu0 %v148
    %v150 = vpop.xlane.xlu0 %149
    %v151 = vsub.f32 %v142, %v147
    %v152 = vsub.f32 %v143, %v150
    %v153 = vmul.f32 %v151, 1.442695
    %v154 = vpow.pop %v153
    %v155 = vmul.f32 %v152, 1.442695
    %v156 = vpow.pop %v155
    %v157 = vsel %vm144, %v154, 0.0
    %158 = vadd.xlane.f32.xlu0 %v157
    %v159 = vpop.xlane.xlu0 %158
    %v160 = vsel %vm144, %v156, 0.0
    %161 = vadd.xlane.f32.xlu0 %v160
    %v162 = vpop.xlane.xlu0 %161
    %v163 = vrcp.pop %v159
    %v164 = vmul.f32 %v159, %v163
    %v165 = vsub.f32 1.0, %v164
    %v166 = vmul.f32 %v163, %v165
    %v167 = vadd.f32 %v163, %v166
    %vm168 = vweird.f32 %v159
    %vm169 = vweird.f32 %v163
    %vm170 = vmor %vm168, %vm169
    %v171 = vsel %vm170, %v163, %v167
    %v172 = vand.u32 2147483647, %v159
    %vm173 = vcmp.eq.f32.partialorder %v172, 8.507059e+37
    %v174 = vand.u32 %v159, 2147483648
    %v175 = vor.u32 1.1754944e-38, %v174
    %v176 = vsel %vm173, %v175, %v171
    %v177 = vmul.f32 %v154, %v176
    %v178 = vrcp.pop %v162
    %v179 = vmul.f32 %v162, %v178
    %v180 = vsub.f32 1.0, %v179
    %v181 = vmul.f32 %v178, %v180
    %v182 = vadd.f32 %v178, %v181
    %vm183 = vweird.f32 %v162
    %vm184 = vweird.f32 %v178
    %vm185 = vmor %vm183, %vm184
    %v186 = vsel %vm185, %v178, %v182
    %v187 = vand.u32 2147483647, %v162
    %vm188 = vcmp.eq.f32.partialorder %v187, 8.507059e+37
    %v189 = vand.u32 %v162, 2147483648
    %v190 = vor.u32 1.1754944e-38, %v189
    %v191 = vsel %vm188, %v190, %v186
    %v192 = vmul.f32 %v156, %v191
    %193 = vrot.lane.b32.xlu0 %v82, 96
    %v194 = vpop.permute.xlu0 %193
    %v197 = vsel %vm144, %v177, 0
    %199 = vmatpush.msra.mxu0 0.0
    %200 = vmatpush.msra.mxu0 0.0
    %201 = vmatpush.msra.mxu0 0.0
    %202 = vmatpush.msra.mxu0 0.0
    %203 = vmatpush.msra.mxu0 0.0
    %204 = vmatpush.msra.mxu0 0.0
    %205 = vmatpush.msra.mxu0 0.0
    %206 = vmatpush.msra.mxu0 0.0
    %207 = vmatpush.msra.mxu0 0.0
    %208 = vmatpush.msra.mxu0 0.0
    %209 = vmatpush.msra.mxu0 0.0
    %210 = vmatpush.msra.mxu0 0.0
    %211 = vmatpush.msra.mxu0 0.0
    %212 = vmatpush.msra.mxu0 0.0
    %213 = vmatpush.msra.mxu0 0.0
    %214 = vmatpush.msra.mxu0 %v194
    %215 = vmatmul.f32.gmra.mxu0 %v197
    %v216 = vpop.f32.mrf.mxu0
    %v217 = vadd.f32 0.0, %v216
    %218 = vdwg.mxu0
    %219 = vrot.lane.b32.xlu0 %v85, 96
    %v220 = vpop.permute.xlu0 %219
    %v223 = vsel %vm144, %v192, 0
    %225 = vmatpush.msra.mxu0 0.0
    %226 = vmatpush.msra.mxu0 0.0
    %227 = vmatpush.msra.mxu0 0.0
    %228 = vmatpush.msra.mxu0 0.0
    %229 = vmatpush.msra.mxu0 0.0
    %230 = vmatpush.msra.mxu0 0.0
    %231 = vmatpush.msra.mxu0 0.0
    %232 = vmatpush.msra.mxu0 0.0
    %233 = vmatpush.msra.mxu0 0.0
    %234 = vmatpush.msra.mxu0 0.0
    %235 = vmatpush.msra.mxu0 0.0
    %236 = vmatpush.msra.mxu0 0.0
    %237 = vmatpush.msra.mxu0 0.0
    %238 = vmatpush.msra.mxu0 0.0
    %239 = vmatpush.msra.mxu0 0.0
    %240 = vmatpush.msra.mxu0 %v220
    %241 = vmatmul.f32.gmra.mxu0 %v223
    %v242 = vpop.f32.mrf.mxu0
    %v243 = vadd.f32 0.0, %v242
    %244 = vdwg.mxu0
    %245 = vst.msk [vmem:[#allocation7] sm:$0xff] %vm90, %v217
    %246 = vst.msk [vmem:[#allocation7 + $0x8] sm:$0xff] %vm90, %v243
    // Predicated region
    $region22: #{tpu_custom_call.1} parent=1 // pred_check
      _
    $region23: #{tpu_custom_call.1} parent=1 // pred_check_branch
      %248 = sbr.rel (0) target = $region25
    $region24: #{tpu_custom_call.1} parent=1 // pred_region
      %250 = vsyncadd [#allocation4], 0
      %s251 = sshll.u32 [#allocation7], 4
      %s252 = int_to_ptr.vmem [resolvable:$true] %s251
      %s253 = sshll.u32 %s3, 4
      %s254 = int_to_ptr.hbm [resolvable:$true] %s253
      %259 = dma.vmem_to_hbm [thread:$0]  %s252, 256, %s254, [#allocation4], 128, 128, 8
    $region25: #{tpu_custom_call.1} parent=1 // pred_fallthru
      _
    // Predicated region
    $region26: #{tpu_custom_call.1} parent=1 // pred_check
      _
    $region27: #{tpu_custom_call.1} parent=1 // pred_check_branch
      %261 = sbr.rel (0) target = $region29
    $region28: #{tpu_custom_call.1} parent=1 // pred_region
      %263 = dma.done [#allocation4], 256
    $region29: #{tpu_custom_call.1} parent=1 // pred_fallthru
      _
    %264 = vsyncpa [#allocation3], 1
    %265 = vsyncpa [#allocation6], 1
    %266 = vsyncpa [#allocation4], 1

</llo_original>
